<compile_context>
chip_gen: v6e
topology: v6e:2x2x1
jax: 0.10.0
libtpu: 0.0.40
codegen_flags: <defaults>
</compile_context>

<pallas_src>
import functools

import jax
import jax.numpy as jnp
import numpy as np
from jax import lax
from jax.experimental import pallas as pl
from jax.experimental.pallas import tpu as pltpu

LANE = 128   # TPU lane width
GATE = 32    # per-gate lane sub-block stride (supports hidden_dim <= 32)


def _gru_de_kernel(xh0_ref, w_first_ref, w_loop_ref, b_first_ref, b_loop_ref,
                   out_ref, *, num_steps):
    """Whole decode loop in one kernel; all operands resident in VMEM.

    Column layout:
      gate block (128 lanes, sub-blocks of 32):
        [  0: 32) r-gate pre-activation    [ 32: 64) z-gate pre-activation
        [ 64: 96) gi_n                     [ 96:128) gh_n
      head block (only in w_loop, lanes [128:256)): y = h @ w_out^T + b_out,
        replicated over all 128 lanes.
    """
    G, L = GATE, LANE
    xh0 = xh0_ref[...]            # (bp, 2G) f32 = [x0 | h0]
    w_first = w_first_ref[...]    # (2G, L)  bf16  step-0 weights (real x0 input)
    w_loop = w_loop_ref[...]      # (G, 2L)  bf16  W_hh + rank-1 feedback + head
    b_first = b_first_ref[...]    # (1, L)   f32
    bp = xh0.shape[0]

    # Hoist the bias broadcast out of the unrolled loop (no CSE of
    # broadcast_in_dim in JAX).
    b_loop = jnp.broadcast_to(b_loop_ref[...], (bp, 2 * L))

    h = xh0[:, G:2 * G]           # (bp, G) f32 initial hidden (padded lanes zero)
    lane = lax.broadcasted_iota(jnp.int32, (bp, L), 1)
    out_acc = jnp.zeros((bp, L), jnp.float32)

    def gru_update(gates, h):
        # gates: (bp, L) f32 pre-activations; 32-lane sub-block slices.
        r = jax.nn.sigmoid(gates[:, 0:G])
        z = jax.nn.sigmoid(gates[:, G:2 * G])
        n = jnp.tanh(gates[:, 2 * G:3 * G] + r * gates[:, 3 * G:4 * G])
        return (1.0 - z) * n + z * h

    # Step 0: real (B, H) input; one stacked matmul [x0 | h0] @ w_first.
    s = jnp.dot(xh0.astype(jnp.bfloat16), w_first,
                preferred_element_type=jnp.float32) + b_first
    h = gru_update(s, h)

    # Steps 1..num_steps: one fused (bp, 32) x (32, 256) bf16 matmul per step
    # against the SAME VMEM-resident RHS.  The head block of s holds y_{t-1}
    # replicated over all 128 lanes; a pure-VPU compare/select captures it
    # into lane (t-1) of the output accumulator.
    # TODO(synk): drive the MXU via pltpu.matmul_push_rhs / matmul_acc_lhs to
    # latch the shared RHS once, if the bundle dump shows redundant per-step
    # weight pushes.
    for t in range(1, num_steps + 1):
        s = jnp.dot(h.astype(jnp.bfloat16), w_loop,
                    preferred_element_type=jnp.float32) + b_loop
        out_acc = jnp.where(lane == (t - 1), s[:, L:2 * L], out_acc)
        if t < num_steps:
            h = gru_update(s[:, 0:L], h)

    out_ref[...] = out_acc        # single dense (bp, 128) store


def init_params(key, hidden_dim):
    """Deterministic init matching PyTorch's default U(-1/sqrt(H), 1/sqrt(H))."""
    k = 1.0 / np.sqrt(hidden_dim)
    ks = jax.random.split(key, 6)
    u = lambda kk, shape: jax.random.uniform(kk, shape, jnp.float32, -k, k)
    return {
        "w_ih": u(ks[0], (3 * hidden_dim, hidden_dim)),
        "w_hh": u(ks[1], (3 * hidden_dim, hidden_dim)),
        "b_ih": u(ks[2], (3 * hidden_dim,)),
        "b_hh": u(ks[3], (3 * hidden_dim,)),
        "w_out": u(ks[4], (1, hidden_dim)),
        "b_out": u(ks[5], (1,)),
    }


def _prepare_fused_weights(params, hidden_dim):
    """Weight fusion (runs inside the jitted wrapper -> compiled once)."""
    H, G, L = hidden_dim, GATE, LANE
    f32 = jnp.float32
    wih_t = params["w_ih"].T.astype(f32)       # (H, 3H) cols: r | z | n
    whh_t = params["w_hh"].T.astype(f32)
    wout = params["w_out"].T.astype(f32)       # (H, 1)
    b_ih = params["b_ih"].astype(f32)
    b_hh = params["b_hh"].astype(f32)
    b_out = params["b_out"].astype(f32)[0]

    wih_r, wih_z, wih_n = wih_t[:, 0:H], wih_t[:, H:2 * H], wih_t[:, 2 * H:3 * H]
    whh_r, whh_z, whh_n = whh_t[:, 0:H], whh_t[:, H:2 * H], whh_t[:, 2 * H:3 * H]
    b_ir, b_iz, b_in = b_ih[0:H], b_ih[H:2 * H], b_ih[2 * H:3 * H]
    b_hr, b_hz, b_hn = b_hh[0:H], b_hh[H:2 * H], b_hh[2 * H:3 * H]

    # colsum of W_ih^T: broadcast(y) @ W_ih^T == y * colsum.
    cs = jnp.sum(wih_t, axis=0)                # (3H,)
    cs_r, cs_z, cs_n = cs[0:H], cs[H:2 * H], cs[2 * H:3 * H]
    wv = wout[:, 0]                            # (H,)

    # Step-0 weights: operand is [x0 | h0] packed into 2*G lanes.
    w_first = jnp.zeros((2 * G, L), f32)
    w_first = w_first.at[0:H, 0:H].set(wih_r)
    w_first = w_first.at[0:H, G:G + H].set(wih_z)
    w_first = w_first.at[0:H, 2 * G:2 * G + H].set(wih_n)
    w_first = w_first.at[G:G + H, 0:H].set(whh_r)
    w_first = w_first.at[G:G + H, G:G + H].set(whh_z)
    w_first = w_first.at[G:G + H, 3 * G:3 * G + H].set(whh_n)

    b_first = jnp.zeros((1, L), f32)
    b_first = b_first.at[0, 0:H].set(b_ir + b_hr)
    b_first = b_first.at[0, G:G + H].set(b_iz + b_hz)
    b_first = b_first.at[0, 2 * G:2 * G + H].set(b_in)
    b_first = b_first.at[0, 3 * G:3 * G + H].set(b_hn)

    # Loop weights: W_hh + rank-1 feedback (y_{t-1} * colsum folded in via
    # w_out) in the gate block, Linear head replicated in the head block.
    w_loop = jnp.zeros((G, 2 * L), f32)
    w_loop = w_loop.at[0:H, 0:H].set(whh_r + jnp.outer(wv, cs_r))
    w_loop = w_loop.at[0:H, G:G + H].set(whh_z + jnp.outer(wv, cs_z))
    w_loop = w_loop.at[0:H, 2 * G:2 * G + H].set(jnp.outer(wv, cs_n))
    w_loop = w_loop.at[0:H, 3 * G:3 * G + H].set(whh_n)
    w_loop = w_loop.at[0:H, L:2 * L].set(jnp.broadcast_to(wout, (H, L)))

    b_loop = jnp.zeros((1, 2 * L), f32)
    b_loop = b_loop.at[0, 0:H].set(b_ir + b_hr + b_out * cs_r)
    b_loop = b_loop.at[0, G:G + H].set(b_iz + b_hz + b_out * cs_z)
    b_loop = b_loop.at[0, 2 * G:2 * G + H].set(b_in + b_out * cs_n)
    b_loop = b_loop.at[0, 3 * G:3 * G + H].set(b_hn)
    b_loop = b_loop.at[0, L:2 * L].set(b_out)

    # bf16 matmul operands (f32 accumulation in-kernel); biases stay f32.
    return (w_first.astype(jnp.bfloat16), w_loop.astype(jnp.bfloat16),
            b_first, b_loop)


@functools.partial(jax.jit, static_argnames=("num_steps",))
def gru_de_forward(in_data, hidden, params, num_steps):
    B, H = in_data.shape
    G, L = GATE, LANE
    # TODO(synk): fall back to one 128-lane block per gate for hidden_dim > 32.
    assert H <= G, "compact layout packs all 4 gates into one 128-lane block"
    assert 1 <= num_steps <= L, "output accumulator holds one lane per step"
    bp = max(8, -(-B // 8) * 8)                 # pad batch to a full sublane group

    xh0 = jnp.zeros((bp, 2 * G), jnp.float32)
    xh0 = xh0.at[:B, 0:H].set(in_data.astype(jnp.float32))
    xh0 = xh0.at[:B, G:G + H].set(hidden.astype(jnp.float32))

    w_first, w_loop, b_first, b_loop = _prepare_fused_weights(params, H)
    kernel = functools.partial(_gru_de_kernel, num_steps=num_steps)

    # No grid: a single kernel invocation with everything (< 32 KiB of weights
    # + state) VMEM-resident; avoids the pipelining prologue / double-buffering.
    # TODO(synk): for large batches add a "parallel" batch-tile grid axis so
    # v7x's second TensorCore gets its own batch slice.
    out = pl.pallas_call(
        kernel,
        out_shape=jax.ShapeDtypeStruct((bp, L), jnp.float32),
        in_specs=[pl.BlockSpec(memory_space=pltpu.MemorySpace.VMEM)] * 5,
        out_specs=pl.BlockSpec(memory_space=pltpu.MemorySpace.VMEM),
    )(xh0, w_first, w_loop, b_first, b_loop)
    return out[:B, :num_steps]


def gru_de_reference(in_data, hidden, params, num_steps):
    """Pure-JAX f32 reference of the same forward pass (correctness check)."""
    x, h = in_data, hidden
    H = hidden.shape[1]
    outs = []
    for _ in range(num_steps):
        gi = x @ params["w_ih"].T + params["b_ih"]
        gh = h @ params["w_hh"].T + params["b_hh"]
        r = jax.nn.sigmoid(gi[:, :H] + gh[:, :H])
        z = jax.nn.sigmoid(gi[:, H:2 * H] + gh[:, H:2 * H])
        n = jnp.tanh(gi[:, 2 * H:] + r * gh[:, 2 * H:])
        h = (1.0 - z) * n + z * h
        y = h @ params["w_out"].T + params["b_out"]     # (B, 1)
        outs.append(y[:, 0])
        # TODO(synk): PyTorch feeds the (B,1) prediction into a GRU expecting
        # input_size == hidden_dim (errors for hidden_dim > 1); the scalar is
        # broadcast across the input features (exact match for hidden_dim == 1).
        x = jnp.broadcast_to(y, (y.shape[0], H))
    return jnp.stack(outs, axis=1)                      # (B, num_steps)


if __name__ == "__main__":
    batch = 4
    hidden_dim = 32
    num_steps = 8

    key = jax.random.PRNGKey(0)
    k_in, k_h, k_p = jax.random.split(key, 3)
    in_data = jax.random.normal(k_in, (batch, hidden_dim), dtype=jnp.float32)
    hidden = jax.random.normal(k_h, (batch, hidden_dim), dtype=jnp.float32)
    params = init_params(k_p, hidden_dim)

    out = jax.block_until_ready(gru_de_forward(in_data, hidden, params, num_steps))
    ref = jax.block_until_ready(gru_de_reference(in_data, hidden, params, num_steps))

    # bf16 MXU operands (f32 accumulation) -> relaxed tolerance vs f32 reference.
    if out.shape != (batch, num_steps) or not np.allclose(
            np.asarray(out), np.asarray(ref), atol=2e-2, rtol=2e-2):
        raise AssertionError("Pallas kernel result mismatch vs JAX reference")

    print("KERNEL_OK")
</pallas_src>

<mosaic_0001>
module attributes {stable_mosaic.version = 11 : i64} {
  func.func @_gru_de_kernel(%arg0: memref<8x64xf32, #tpu.memory_space<vmem>>, %arg1: memref<64x128xbf16, #tpu.memory_space<vmem>>, %arg2: memref<32x256xbf16, #tpu.memory_space<vmem>>, %arg3: memref<1x128xf32, #tpu.memory_space<vmem>>, %arg4: memref<1x256xf32, #tpu.memory_space<vmem>>, %arg5: memref<8x128xf32, #tpu.memory_space<vmem>>) attributes {dimension_semantics = [], scalar_prefetch = 0 : i64, scratch_operands = 0 : i64, tpu.core_type = #tpu.core_type<tc>} {
    %c0 = arith.constant 0 : index
    %c0_0 = arith.constant 0 : index
    %0 = vector.load %arg0[%c0, %c0_0] : memref<8x64xf32, #tpu.memory_space<vmem>>, vector<8x64xf32>
    %c0_1 = arith.constant 0 : index
    %c0_2 = arith.constant 0 : index
    %1 = vector.load %arg1[%c0_1, %c0_2] : memref<64x128xbf16, #tpu.memory_space<vmem>>, vector<64x128xbf16>
    %c0_3 = arith.constant 0 : index
    %c0_4 = arith.constant 0 : index
    %2 = vector.load %arg2[%c0_3, %c0_4] : memref<32x256xbf16, #tpu.memory_space<vmem>>, vector<32x256xbf16>
    %c0_5 = arith.constant 0 : index
    %c0_6 = arith.constant 0 : index
    %3 = vector.load %arg3[%c0_5, %c0_6] : memref<1x128xf32, #tpu.memory_space<vmem>>, vector<1x128xf32>
    %c0_7 = arith.constant 0 : index
    %c0_8 = arith.constant 0 : index
    %4 = vector.load %arg4[%c0_7, %c0_8] : memref<1x256xf32, #tpu.memory_space<vmem>>, vector<1x256xf32>
    %5 = vector.shape_cast %4 : vector<1x256xf32> to vector<1x256xf32>
    %6 = vector.broadcast %5 : vector<1x256xf32> to vector<8x256xf32>
    %7 = vector.extract_strided_slice %0 {offsets = [0, 32], sizes = [8, 32], strides = [1, 1]} : vector<8x64xf32> to vector<8x32xf32>
    %8 = tpu.iota {dimensions = array<i32: 1>} : vector<8x128xi32>
    %cst = arith.constant 0.000000e+00 : f32
    %9 = vector.broadcast %cst : f32 to vector<8x128xf32>
    %10 = arith.truncf %0 : vector<8x64xf32> to vector<8x64xbf16>
    %cst_9 = arith.constant dense<0.000000e+00> : vector<8x128xf32>
    %11 = tpu.matmul %10, %1, %cst_9 {dimension_numbers = #tpu.dot_dimension_numbers<[1], [0], [0], [1], [0, 0, 1, 1], [], []>} : vector<8x64xbf16>, vector<64x128xbf16>, vector<8x128xf32> -> vector<8x128xf32>
    %12 = vector.broadcast %3 : vector<1x128xf32> to vector<8x128xf32>
    %13 = arith.addf %11, %12 : vector<8x128xf32>
    %14 = vector.extract_strided_slice %13 {offsets = [0, 0], sizes = [8, 32], strides = [1, 1]} : vector<8x128xf32> to vector<8x32xf32>
    %15 = arith.negf %14 : vector<8x32xf32>
    %16 = math.exp %15 : vector<8x32xf32>
    %cst_10 = arith.constant 1.000000e+00 : f32
    %17 = vector.broadcast %cst_10 : f32 to vector<8x32xf32>
    %18 = arith.addf %17, %16 : vector<8x32xf32>
    %19 = arith.divf %17, %18 : vector<8x32xf32>
    %20 = vector.extract_strided_slice %13 {offsets = [0, 32], sizes = [8, 32], strides = [1, 1]} : vector<8x128xf32> to vector<8x32xf32>
    %21 = arith.negf %20 : vector<8x32xf32>
    %22 = math.exp %21 : vector<8x32xf32>
    %cst_11 = arith.constant 1.000000e+00 : f32
    %23 = vector.broadcast %cst_11 : f32 to vector<8x32xf32>
    %24 = arith.addf %23, %22 : vector<8x32xf32>
    %25 = arith.divf %23, %24 : vector<8x32xf32>
    %26 = vector.extract_strided_slice %13 {offsets = [0, 64], sizes = [8, 32], strides = [1, 1]} : vector<8x128xf32> to vector<8x32xf32>
    %27 = vector.extract_strided_slice %13 {offsets = [0, 96], sizes = [8, 32], strides = [1, 1]} : vector<8x128xf32> to vector<8x32xf32>
    %28 = arith.mulf %19, %27 : vector<8x32xf32>
    %29 = arith.addf %26, %28 : vector<8x32xf32>
    %30 = math.tanh %29 : vector<8x32xf32>
    %cst_12 = arith.constant 1.000000e+00 : f32
    %31 = vector.broadcast %cst_12 : f32 to vector<8x32xf32>
    %32 = arith.subf %31, %25 : vector<8x32xf32>
    %33 = arith.mulf %32, %30 : vector<8x32xf32>
    %34 = arith.mulf %25, %7 : vector<8x32xf32>
    %35 = arith.addf %33, %34 : vector<8x32xf32>
    %36 = arith.truncf %35 : vector<8x32xf32> to vector<8x32xbf16>
    %cst_13 = arith.constant dense<0.000000e+00> : vector<8x256xf32>
    %37 = tpu.matmul %36, %2, %cst_13 {dimension_numbers = #tpu.dot_dimension_numbers<[1], [0], [0], [1], [0, 0, 1, 1], [], []>} : vector<8x32xbf16>, vector<32x256xbf16>, vector<8x256xf32> -> vector<8x256xf32>
    %38 = arith.addf %37, %6 : vector<8x256xf32>
    %c0_i32 = arith.constant 0 : i32
    %39 = vector.broadcast %c0_i32 : i32 to vector<8x128xi32>
    %40 = arith.cmpi eq, %8, %39 : vector<8x128xi32>
    %41 = vector.extract_strided_slice %38 {offsets = [0, 128], sizes = [8, 128], strides = [1, 1]} : vector<8x256xf32> to vector<8x128xf32>
    %42 = arith.select %40, %41, %9 : vector<8x128xi1>, vector<8x128xf32>
    %43 = vector.extract_strided_slice %38 {offsets = [0, 0], sizes = [8, 128], strides = [1, 1]} : vector<8x256xf32> to vector<8x128xf32>
    %44 = vector.extract_strided_slice %43 {offsets = [0, 0], sizes = [8, 32], strides = [1, 1]} : vector<8x128xf32> to vector<8x32xf32>
    %45 = arith.negf %44 : vector<8x32xf32>
    %46 = math.exp %45 : vector<8x32xf32>
    %cst_14 = arith.constant 1.000000e+00 : f32
    %47 = vector.broadcast %cst_14 : f32 to vector<8x32xf32>
    %48 = arith.addf %47, %46 : vector<8x32xf32>
    %49 = arith.divf %47, %48 : vector<8x32xf32>
    %50 = vector.extract_strided_slice %43 {offsets = [0, 32], sizes = [8, 32], strides = [1, 1]} : vector<8x128xf32> to vector<8x32xf32>
    %51 = arith.negf %50 : vector<8x32xf32>
    %52 = math.exp %51 : vector<8x32xf32>
    %cst_15 = arith.constant 1.000000e+00 : f32
    %53 = vector.broadcast %cst_15 : f32 to vector<8x32xf32>
    %54 = arith.addf %53, %52 : vector<8x32xf32>
    %55 = arith.divf %53, %54 : vector<8x32xf32>
    %56 = vector.extract_strided_slice %43 {offsets = [0, 64], sizes = [8, 32], strides = [1, 1]} : vector<8x128xf32> to vector<8x32xf32>
    %57 = vector.extract_strided_slice %43 {offsets = [0, 96], sizes = [8, 32], strides = [1, 1]} : vector<8x128xf32> to vector<8x32xf32>
    %58 = arith.mulf %49, %57 : vector<8x32xf32>
    %59 = arith.addf %56, %58 : vector<8x32xf32>
    %60 = math.tanh %59 : vector<8x32xf32>
    %cst_16 = arith.constant 1.000000e+00 : f32
    %61 = vector.broadcast %cst_16 : f32 to vector<8x32xf32>
    %62 = arith.subf %61, %55 : vector<8x32xf32>
    %63 = arith.mulf %62, %60 : vector<8x32xf32>
    %64 = arith.mulf %55, %35 : vector<8x32xf32>
    %65 = arith.addf %63, %64 : vector<8x32xf32>
    %66 = arith.truncf %65 : vector<8x32xf32> to vector<8x32xbf16>
    %cst_17 = arith.constant dense<0.000000e+00> : vector<8x256xf32>
    %67 = tpu.matmul %66, %2, %cst_17 {dimension_numbers = #tpu.dot_dimension_numbers<[1], [0], [0], [1], [0, 0, 1, 1], [], []>} : vector<8x32xbf16>, vector<32x256xbf16>, vector<8x256xf32> -> vector<8x256xf32>
    %68 = arith.addf %67, %6 : vector<8x256xf32>
    %c1_i32 = arith.constant 1 : i32
    %69 = vector.broadcast %c1_i32 : i32 to vector<8x128xi32>
    %70 = arith.cmpi eq, %8, %69 : vector<8x128xi32>
    %71 = vector.extract_strided_slice %68 {offsets = [0, 128], sizes = [8, 128], strides = [1, 1]} : vector<8x256xf32> to vector<8x128xf32>
    %72 = arith.select %70, %71, %42 : vector<8x128xi1>, vector<8x128xf32>
    %73 = vector.extract_strided_slice %68 {offsets = [0, 0], sizes = [8, 128], strides = [1, 1]} : vector<8x256xf32> to vector<8x128xf32>
    %74 = vector.extract_strided_slice %73 {offsets = [0, 0], sizes = [8, 32], strides = [1, 1]} : vector<8x128xf32> to vector<8x32xf32>
    %75 = arith.negf %74 : vector<8x32xf32>
    %76 = math.exp %75 : vector<8x32xf32>
    %cst_18 = arith.constant 1.000000e+00 : f32
    %77 = vector.broadcast %cst_18 : f32 to vector<8x32xf32>
    %78 = arith.addf %77, %76 : vector<8x32xf32>
    %79 = arith.divf %77, %78 : vector<8x32xf32>
    %80 = vector.extract_strided_slice %73 {offsets = [0, 32], sizes = [8, 32], strides = [1, 1]} : vector<8x128xf32> to vector<8x32xf32>
    %81 = arith.negf %80 : vector<8x32xf32>
    %82 = math.exp %81 : vector<8x32xf32>
    %cst_19 = arith.constant 1.000000e+00 : f32
    %83 = vector.broadcast %cst_19 : f32 to vector<8x32xf32>
    %84 = arith.addf %83, %82 : vector<8x32xf32>
    %85 = arith.divf %83, %84 : vector<8x32xf32>
    %86 = vector.extract_strided_slice %73 {offsets = [0, 64], sizes = [8, 32], strides = [1, 1]} : vector<8x128xf32> to vector<8x32xf32>
    %87 = vector.extract_strided_slice %73 {offsets = [0, 96], sizes = [8, 32], strides = [1, 1]} : vector<8x128xf32> to vector<8x32xf32>
    %88 = arith.mulf %79, %87 : vector<8x32xf32>
    %89 = arith.addf %86, %88 : vector<8x32xf32>
    %90 = math.tanh %89 : vector<8x32xf32>
    %cst_20 = arith.constant 1.000000e+00 : f32
    %91 = vector.broadcast %cst_20 : f32 to vector<8x32xf32>
    %92 = arith.subf %91, %85 : vector<8x32xf32>
    %93 = arith.mulf %92, %90 : vector<8x32xf32>
    %94 = arith.mulf %85, %65 : vector<8x32xf32>
    %95 = arith.addf %93, %94 : vector<8x32xf32>
    %96 = arith.truncf %95 : vector<8x32xf32> to vector<8x32xbf16>
    %cst_21 = arith.constant dense<0.000000e+00> : vector<8x256xf32>
    %97 = tpu.matmul %96, %2, %cst_21 {dimension_numbers = #tpu.dot_dimension_numbers<[1], [0], [0], [1], [0, 0, 1, 1], [], []>} : vector<8x32xbf16>, vector<32x256xbf16>, vector<8x256xf32> -> vector<8x256xf32>
    %98 = arith.addf %97, %6 : vector<8x256xf32>
    %c2_i32 = arith.constant 2 : i32
    %99 = vector.broadcast %c2_i32 : i32 to vector<8x128xi32>
    %100 = arith.cmpi eq, %8, %99 : vector<8x128xi32>
    %101 = vector.extract_strided_slice %98 {offsets = [0, 128], sizes = [8, 128], strides = [1, 1]} : vector<8x256xf32> to vector<8x128xf32>
    %102 = arith.select %100, %101, %72 : vector<8x128xi1>, vector<8x128xf32>
    %103 = vector.extract_strided_slice %98 {offsets = [0, 0], sizes = [8, 128], strides = [1, 1]} : vector<8x256xf32> to vector<8x128xf32>
    %104 = vector.extract_strided_slice %103 {offsets = [0, 0], sizes = [8, 32], strides = [1, 1]} : vector<8x128xf32> to vector<8x32xf32>
    %105 = arith.negf %104 : vector<8x32xf32>
    %106 = math.exp %105 : vector<8x32xf32>
    %cst_22 = arith.constant 1.000000e+00 : f32
    %107 = vector.broadcast %cst_22 : f32 to vector<8x32xf32>
    %108 = arith.addf %107, %106 : vector<8x32xf32>
    %109 = arith.divf %107, %108 : vector<8x32xf32>
    %110 = vector.extract_strided_slice %103 {offsets = [0, 32], sizes = [8, 32], strides = [1, 1]} : vector<8x128xf32> to vector<8x32xf32>
    %111 = arith.negf %110 : vector<8x32xf32>
    %112 = math.exp %111 : vector<8x32xf32>
    %cst_23 = arith.constant 1.000000e+00 : f32
    %113 = vector.broadcast %cst_23 : f32 to vector<8x32xf32>
    %114 = arith.addf %113, %112 : vector<8x32xf32>
    %115 = arith.divf %113, %114 : vector<8x32xf32>
    %116 = vector.extract_strided_slice %103 {offsets = [0, 64], sizes = [8, 32], strides = [1, 1]} : vector<8x128xf32> to vector<8x32xf32>
    %117 = vector.extract_strided_slice %103 {offsets = [0, 96], sizes = [8, 32], strides = [1, 1]} : vector<8x128xf32> to vector<8x32xf32>
    %118 = arith.mulf %109, %117 : vector<8x32xf32>
    %119 = arith.addf %116, %118 : vector<8x32xf32>
    %120 = math.tanh %119 : vector<8x32xf32>
    %cst_24 = arith.constant 1.000000e+00 : f32
    %121 = vector.broadcast %cst_24 : f32 to vector<8x32xf32>
    %122 = arith.subf %121, %115 : vector<8x32xf32>
    %123 = arith.mulf %122, %120 : vector<8x32xf32>
    %124 = arith.mulf %115, %95 : vector<8x32xf32>
    %125 = arith.addf %123, %124 : vector<8x32xf32>
    %126 = arith.truncf %125 : vector<8x32xf32> to vector<8x32xbf16>
    %cst_25 = arith.constant dense<0.000000e+00> : vector<8x256xf32>
    %127 = tpu.matmul %126, %2, %cst_25 {dimension_numbers = #tpu.dot_dimension_numbers<[1], [0], [0], [1], [0, 0, 1, 1], [], []>} : vector<8x32xbf16>, vector<32x256xbf16>, vector<8x256xf32> -> vector<8x256xf32>
    %128 = arith.addf %127, %6 : vector<8x256xf32>
    %c3_i32 = arith.constant 3 : i32
    %129 = vector.broadcast %c3_i32 : i32 to vector<8x128xi32>
    %130 = arith.cmpi eq, %8, %129 : vector<8x128xi32>
    %131 = vector.extract_strided_slice %128 {offsets = [0, 128], sizes = [8, 128], strides = [1, 1]} : vector<8x256xf32> to vector<8x128xf32>
    %132 = arith.select %130, %131, %102 : vector<8x128xi1>, vector<8x128xf32>
    %133 = vector.extract_strided_slice %128 {offsets = [0, 0], sizes = [8, 128], strides = [1, 1]} : vector<8x256xf32> to vector<8x128xf32>
    %134 = vector.extract_strided_slice %133 {offsets = [0, 0], sizes = [8, 32], strides = [1, 1]} : vector<8x128xf32> to vector<8x32xf32>
    %135 = arith.negf %134 : vector<8x32xf32>
    %136 = math.exp %135 : vector<8x32xf32>
    %cst_26 = arith.constant 1.000000e+00 : f32
    %137 = vector.broadcast %cst_26 : f32 to vector<8x32xf32>
    %138 = arith.addf %137, %136 : vector<8x32xf32>
    %139 = arith.divf %137, %138 : vector<8x32xf32>
    %140 = vector.extract_strided_slice %133 {offsets = [0, 32], sizes = [8, 32], strides = [1, 1]} : vector<8x128xf32> to vector<8x32xf32>
    %141 = arith.negf %140 : vector<8x32xf32>
    %142 = math.exp %141 : vector<8x32xf32>
    %cst_27 = arith.constant 1.000000e+00 : f32
    %143 = vector.broadcast %cst_27 : f32 to vector<8x32xf32>
    %144 = arith.addf %143, %142 : vector<8x32xf32>
    %145 = arith.divf %143, %144 : vector<8x32xf32>
    %146 = vector.extract_strided_slice %133 {offsets = [0, 64], sizes = [8, 32], strides = [1, 1]} : vector<8x128xf32> to vector<8x32xf32>
    %147 = vector.extract_strided_slice %133 {offsets = [0, 96], sizes = [8, 32], strides = [1, 1]} : vector<8x128xf32> to vector<8x32xf32>
    %148 = arith.mulf %139, %147 : vector<8x32xf32>
    %149 = arith.addf %146, %148 : vector<8x32xf32>
    %150 = math.tanh %149 : vector<8x32xf32>
    %cst_28 = arith.constant 1.000000e+00 : f32
    %151 = vector.broadcast %cst_28 : f32 to vector<8x32xf32>
    %152 = arith.subf %151, %145 : vector<8x32xf32>
    %153 = arith.mulf %152, %150 : vector<8x32xf32>
    %154 = arith.mulf %145, %125 : vector<8x32xf32>
    %155 = arith.addf %153, %154 : vector<8x32xf32>
    %156 = arith.truncf %155 : vector<8x32xf32> to vector<8x32xbf16>
    %cst_29 = arith.constant dense<0.000000e+00> : vector<8x256xf32>
    %157 = tpu.matmul %156, %2, %cst_29 {dimension_numbers = #tpu.dot_dimension_numbers<[1], [0], [0], [1], [0, 0, 1, 1], [], []>} : vector<8x32xbf16>, vector<32x256xbf16>, vector<8x256xf32> -> vector<8x256xf32>
    %158 = arith.addf %157, %6 : vector<8x256xf32>
    %c4_i32 = arith.constant 4 : i32
    %159 = vector.broadcast %c4_i32 : i32 to vector<8x128xi32>
    %160 = arith.cmpi eq, %8, %159 : vector<8x128xi32>
    %161 = vector.extract_strided_slice %158 {offsets = [0, 128], sizes = [8, 128], strides = [1, 1]} : vector<8x256xf32> to vector<8x128xf32>
    %162 = arith.select %160, %161, %132 : vector<8x128xi1>, vector<8x128xf32>
    %163 = vector.extract_strided_slice %158 {offsets = [0, 0], sizes = [8, 128], strides = [1, 1]} : vector<8x256xf32> to vector<8x128xf32>
    %164 = vector.extract_strided_slice %163 {offsets = [0, 0], sizes = [8, 32], strides = [1, 1]} : vector<8x128xf32> to vector<8x32xf32>
    %165 = arith.negf %164 : vector<8x32xf32>
    %166 = math.exp %165 : vector<8x32xf32>
    %cst_30 = arith.constant 1.000000e+00 : f32
    %167 = vector.broadcast %cst_30 : f32 to vector<8x32xf32>
    %168 = arith.addf %167, %166 : vector<8x32xf32>
    %169 = arith.divf %167, %168 : vector<8x32xf32>
    %170 = vector.extract_strided_slice %163 {offsets = [0, 32], sizes = [8, 32], strides = [1, 1]} : vector<8x128xf32> to vector<8x32xf32>
    %171 = arith.negf %170 : vector<8x32xf32>
    %172 = math.exp %171 : vector<8x32xf32>
    %cst_31 = arith.constant 1.000000e+00 : f32
    %173 = vector.broadcast %cst_31 : f32 to vector<8x32xf32>
    %174 = arith.addf %173, %172 : vector<8x32xf32>
    %175 = arith.divf %173, %174 : vector<8x32xf32>
    %176 = vector.extract_strided_slice %163 {offsets = [0, 64], sizes = [8, 32], strides = [1, 1]} : vector<8x128xf32> to vector<8x32xf32>
    %177 = vector.extract_strided_slice %163 {offsets = [0, 96], sizes = [8, 32], strides = [1, 1]} : vector<8x128xf32> to vector<8x32xf32>
    %178 = arith.mulf %169, %177 : vector<8x32xf32>
    %179 = arith.addf %176, %178 : vector<8x32xf32>
    %180 = math.tanh %179 : vector<8x32xf32>
    %cst_32 = arith.constant 1.000000e+00 : f32
    %181 = vector.broadcast %cst_32 : f32 to vector<8x32xf32>
    %182 = arith.subf %181, %175 : vector<8x32xf32>
    %183 = arith.mulf %182, %180 : vector<8x32xf32>
    %184 = arith.mulf %175, %155 : vector<8x32xf32>
    %185 = arith.addf %183, %184 : vector<8x32xf32>
    %186 = arith.truncf %185 : vector<8x32xf32> to vector<8x32xbf16>
    %cst_33 = arith.constant dense<0.000000e+00> : vector<8x256xf32>
    %187 = tpu.matmul %186, %2, %cst_33 {dimension_numbers = #tpu.dot_dimension_numbers<[1], [0], [0], [1], [0, 0, 1, 1], [], []>} : vector<8x32xbf16>, vector<32x256xbf16>, vector<8x256xf32> -> vector<8x256xf32>
    %188 = arith.addf %187, %6 : vector<8x256xf32>
    %c5_i32 = arith.constant 5 : i32
    %189 = vector.broadcast %c5_i32 : i32 to vector<8x128xi32>
    %190 = arith.cmpi eq, %8, %189 : vector<8x128xi32>
    %191 = vector.extract_strided_slice %188 {offsets = [0, 128], sizes = [8, 128], strides = [1, 1]} : vector<8x256xf32> to vector<8x128xf32>
    %192 = arith.select %190, %191, %162 : vector<8x128xi1>, vector<8x128xf32>
    %193 = vector.extract_strided_slice %188 {offsets = [0, 0], sizes = [8, 128], strides = [1, 1]} : vector<8x256xf32> to vector<8x128xf32>
    %194 = vector.extract_strided_slice %193 {offsets = [0, 0], sizes = [8, 32], strides = [1, 1]} : vector<8x128xf32> to vector<8x32xf32>
    %195 = arith.negf %194 : vector<8x32xf32>
    %196 = math.exp %195 : vector<8x32xf32>
    %cst_34 = arith.constant 1.000000e+00 : f32
    %197 = vector.broadcast %cst_34 : f32 to vector<8x32xf32>
    %198 = arith.addf %197, %196 : vector<8x32xf32>
    %199 = arith.divf %197, %198 : vector<8x32xf32>
    %200 = vector.extract_strided_slice %193 {offsets = [0, 32], sizes = [8, 32], strides = [1, 1]} : vector<8x128xf32> to vector<8x32xf32>
    %201 = arith.negf %200 : vector<8x32xf32>
    %202 = math.exp %201 : vector<8x32xf32>
    %cst_35 = arith.constant 1.000000e+00 : f32
    %203 = vector.broadcast %cst_35 : f32 to vector<8x32xf32>
    %204 = arith.addf %203, %202 : vector<8x32xf32>
    %205 = arith.divf %203, %204 : vector<8x32xf32>
    %206 = vector.extract_strided_slice %193 {offsets = [0, 64], sizes = [8, 32], strides = [1, 1]} : vector<8x128xf32> to vector<8x32xf32>
    %207 = vector.extract_strided_slice %193 {offsets = [0, 96], sizes = [8, 32], strides = [1, 1]} : vector<8x128xf32> to vector<8x32xf32>
    %208 = arith.mulf %199, %207 : vector<8x32xf32>
    %209 = arith.addf %206, %208 : vector<8x32xf32>
    %210 = math.tanh %209 : vector<8x32xf32>
    %cst_36 = arith.constant 1.000000e+00 : f32
    %211 = vector.broadcast %cst_36 : f32 to vector<8x32xf32>
    %212 = arith.subf %211, %205 : vector<8x32xf32>
    %213 = arith.mulf %212, %210 : vector<8x32xf32>
    %214 = arith.mulf %205, %185 : vector<8x32xf32>
    %215 = arith.addf %213, %214 : vector<8x32xf32>
    %216 = arith.truncf %215 : vector<8x32xf32> to vector<8x32xbf16>
    %cst_37 = arith.constant dense<0.000000e+00> : vector<8x256xf32>
    %217 = tpu.matmul %216, %2, %cst_37 {dimension_numbers = #tpu.dot_dimension_numbers<[1], [0], [0], [1], [0, 0, 1, 1], [], []>} : vector<8x32xbf16>, vector<32x256xbf16>, vector<8x256xf32> -> vector<8x256xf32>
    %218 = arith.addf %217, %6 : vector<8x256xf32>
    %c6_i32 = arith.constant 6 : i32
    %219 = vector.broadcast %c6_i32 : i32 to vector<8x128xi32>
    %220 = arith.cmpi eq, %8, %219 : vector<8x128xi32>
    %221 = vector.extract_strided_slice %218 {offsets = [0, 128], sizes = [8, 128], strides = [1, 1]} : vector<8x256xf32> to vector<8x128xf32>
    %222 = arith.select %220, %221, %192 : vector<8x128xi1>, vector<8x128xf32>
    %223 = vector.extract_strided_slice %218 {offsets = [0, 0], sizes = [8, 128], strides = [1, 1]} : vector<8x256xf32> to vector<8x128xf32>
    %224 = vector.extract_strided_slice %223 {offsets = [0, 0], sizes = [8, 32], strides = [1, 1]} : vector<8x128xf32> to vector<8x32xf32>
    %225 = arith.negf %224 : vector<8x32xf32>
    %226 = math.exp %225 : vector<8x32xf32>
    %cst_38 = arith.constant 1.000000e+00 : f32
    %227 = vector.broadcast %cst_38 : f32 to vector<8x32xf32>
    %228 = arith.addf %227, %226 : vector<8x32xf32>
    %229 = arith.divf %227, %228 : vector<8x32xf32>
    %230 = vector.extract_strided_slice %223 {offsets = [0, 32], sizes = [8, 32], strides = [1, 1]} : vector<8x128xf32> to vector<8x32xf32>
    %231 = arith.negf %230 : vector<8x32xf32>
    %232 = math.exp %231 : vector<8x32xf32>
    %cst_39 = arith.constant 1.000000e+00 : f32
    %233 = vector.broadcast %cst_39 : f32 to vector<8x32xf32>
    %234 = arith.addf %233, %232 : vector<8x32xf32>
    %235 = arith.divf %233, %234 : vector<8x32xf32>
    %236 = vector.extract_strided_slice %223 {offsets = [0, 64], sizes = [8, 32], strides = [1, 1]} : vector<8x128xf32> to vector<8x32xf32>
    %237 = vector.extract_strided_slice %223 {offsets = [0, 96], sizes = [8, 32], strides = [1, 1]} : vector<8x128xf32> to vector<8x32xf32>
    %238 = arith.mulf %229, %237 : vector<8x32xf32>
    %239 = arith.addf %236, %238 : vector<8x32xf32>
    %240 = math.tanh %239 : vector<8x32xf32>
    %cst_40 = arith.constant 1.000000e+00 : f32
    %241 = vector.broadcast %cst_40 : f32 to vector<8x32xf32>
    %242 = arith.subf %241, %235 : vector<8x32xf32>
    %243 = arith.mulf %242, %240 : vector<8x32xf32>
    %244 = arith.mulf %235, %215 : vector<8x32xf32>
    %245 = arith.addf %243, %244 : vector<8x32xf32>
    %246 = arith.truncf %245 : vector<8x32xf32> to vector<8x32xbf16>
    %cst_41 = arith.constant dense<0.000000e+00> : vector<8x256xf32>
    %247 = tpu.matmul %246, %2, %cst_41 {dimension_numbers = #tpu.dot_dimension_numbers<[1], [0], [0], [1], [0, 0, 1, 1], [], []>} : vector<8x32xbf16>, vector<32x256xbf16>, vector<8x256xf32> -> vector<8x256xf32>
    %248 = arith.addf %247, %6 : vector<8x256xf32>
    %c7_i32 = arith.constant 7 : i32
    %249 = vector.broadcast %c7_i32 : i32 to vector<8x128xi32>
    %250 = arith.cmpi eq, %8, %249 : vector<8x128xi32>
    %251 = vector.extract_strided_slice %248 {offsets = [0, 128], sizes = [8, 128], strides = [1, 1]} : vector<8x256xf32> to vector<8x128xf32>
    %252 = arith.select %250, %251, %222 : vector<8x128xi1>, vector<8x128xf32>
    %c0_42 = arith.constant 0 : index
    %c0_43 = arith.constant 0 : index
    %253 = vector.load %arg5[%c0_42, %c0_43] : memref<8x128xf32, #tpu.memory_space<vmem>>, vector<8x128xf32>
    tpu.vector_store %arg5[%c0_42, %c0_43], %252 {strides = array<i32>} : memref<8x128xf32, #tpu.memory_space<vmem>>, vector<8x128xf32>,
    return
  }
}

</mosaic_0001>

<llo_original>
// kernel: gru_de_forward.1
$region0: #{gru_de_forward.1}
  #allocation0 [shape = 'u32[]', space=smem, size = 0x4, offset = 0x4, fixed_abs, tag = 'smem constant byte address 0x4 - core index']
  #allocation1 [shape = 'u32[144,128]{1,0:T(1,128)}', space=vmem, size = 0x12000, scoped, tag = 'internal scratch']
  %s0 = inlined_call_operand.vmem [shape: f32[8,64], index: 0, kind: input, shape index: {}]
  %s1 = inlined_call_operand.vmem [shape: bf16[64,128], index: 1, kind: input, shape index: {}]
  %s2 = inlined_call_operand.vmem [shape: bf16[32,256], index: 2, kind: input, shape index: {}]
  %s3 = inlined_call_operand.vmem [shape: f32[1,128], index: 3, kind: input, shape index: {}]
  %s4 = inlined_call_operand.vmem [shape: f32[1,256], index: 4, kind: input, shape index: {}]
  %s5 = inlined_call_operand.vmem [shape: f32[8,128], index: 5, kind: output, shape index: {}]
  %s6 = sld [smem:[#allocation0]]
  $region30: #{gru_de_forward.1} parent=0
    _
  %s8 = ssub.s32 1, %s6
  %s9 = scalar_select 0, %s8, %s6
  // Predicated region
  $region2: #{gru_de_forward.1} parent=0 // pred_check
    _
  $region3: #{gru_de_forward.1} parent=0 // pred_check_branch
    %11 = sbr.rel (0) target = $region5
  $region4: #{gru_de_forward.1} parent=0 // pred_region
    _
  $region5: #{gru_de_forward.1} parent=0 // pred_fallthru
    _
  // Predicated region
  $region6: #{gru_de_forward.1} parent=0 // pred_check
    _
  $region7: #{gru_de_forward.1} parent=0 // pred_check_branch
    %13 = sbr.rel (0) target = $region9
  $region8: #{gru_de_forward.1} parent=0 // pred_region
    _
  $region9: #{gru_de_forward.1} parent=0 // pred_fallthru
    _
  // Predicated region
  $region10: #{gru_de_forward.1} parent=0 // pred_check
    _
  $region11: #{gru_de_forward.1} parent=0 // pred_check_branch
    %15 = sbr.rel (0) target = $region13
  $region12: #{gru_de_forward.1} parent=0 // pred_region
    _
  $region13: #{gru_de_forward.1} parent=0 // pred_fallthru
    _
  // Predicated region
  $region14: #{gru_de_forward.1} parent=0 // pred_check
    _
  $region15: #{gru_de_forward.1} parent=0 // pred_check_branch
    %17 = sbr.rel (0) target = $region17
  $region16: #{gru_de_forward.1} parent=0 // pred_region
    _
  $region17: #{gru_de_forward.1} parent=0 // pred_fallthru
    _
  // Predicated region
  $region18: #{gru_de_forward.1} parent=0 // pred_check
    _
  $region19: #{gru_de_forward.1} parent=0 // pred_check_branch
    %19 = sbr.rel (0) target = $region21
  $region20: #{gru_de_forward.1} parent=0 // pred_region
    _
  $region21: #{gru_de_forward.1} parent=0 // pred_fallthru
    _
  %v21 = vld [vmem:[%s0] sm:$0xff]
  %v22 = vld [vmem:[%s1] sm:$0xf]
  %v23 = vld [vmem:[%s1 + $0x4] sm:$0xf]
  %v24 = vld [vmem:[%s1 + $0x8] sm:$0xf]
  %v25 = vld [vmem:[%s1 + $0xc] sm:$0xf]
  %v26 = vld [vmem:[%s1 + $0x10] sm:$0xf]
  %v27 = vld [vmem:[%s1 + $0x14] sm:$0xf]
  %v28 = vld [vmem:[%s1 + $0x18] sm:$0xf]
  %v29 = vld [vmem:[%s1 + $0x1c] sm:$0xf]
  %v30 = vld [vmem:[%s2] sm:$0xff]
  %v31 = vld [vmem:[%s2 + $0x8] sm:$0xff]
  %v32 = vld [vmem:[%s2 + $0x10] sm:$0xff]
  %v33 = vld [vmem:[%s2 + $0x18] sm:$0xff]
  %v34 = vld [vmem:[%s3] sm:$0x1]
  %v35 = vld [vmem:[%s4] sm:$0x3]
  %v37 = vlaneseq
  %v38 = vshrl.u32 %v37, 7
  %v39 = vsub.s32 0, %v38
  %v40 = vrot.slane %v35, %v39
  %v41 = vlaneseq
  %v42 = vshrl.u32 %v41, 7
  %v43 = vsub.s32 1, %v42
  %v44 = vrot.slane %v35, %v43
  %v47 = vlaneseq
  %v48 = vand.u32 %v47, 127
  %v49 = vpack.c.bf16 %v21, %v21
  %v51 = vlaneseq
  %v52 = vshrl.u32 %v51, 7
  %v53 = vsub.s32 0, %v52
  %v54 = vrot.slane %v34, %v53
  %v64 = vunpack.c.l.b16 %v22
  %v65 = vunpack.c.l.b16 %v23
  %v66 = vunpack.c.l.b16 %v24
  %v67 = vunpack.c.l.b16 %v25
  %v68 = vunpack.c.l.b16 %v26
  %v69 = vunpack.c.l.b16 %v27
  %v70 = vunpack.c.l.b16 %v28
  %v71 = vunpack.c.l.b16 %v29
  %v72 = vpack.c.b16 %v65, %v64
  %v73 = vpack.c.b16 %v67, %v66
  %v74 = vpack.c.b16 %v69, %v68
  %v75 = vpack.c.b16 %v71, %v70
  %vm80 = vcmask 523264
  %v82 = vsel %vm80, %v49, 0
  %84 = vmatprep.subr.bf16.mxu0 0
  %85 = vmatpush1.bf16.msra.mxu0 0
  %86 = vmatprep.subr.bf16.mxu0 0
  %87 = vmatpush1.bf16.msra.mxu0 0
  %88 = vmatprep.subr.bf16.mxu0 0
  %89 = vmatpush1.bf16.msra.mxu0 0
  %90 = vmatprep.subr.bf16.mxu0 0
  %91 = vmatpush1.bf16.msra.mxu0 0
  %92 = vmatprep.subr.bf16.mxu0 0
  %93 = vmatpush1.bf16.msra.mxu0 %v75
  %94 = vmatprep.subr.bf16.mxu0 0
  %95 = vmatpush1.bf16.msra.mxu0 %v74
  %96 = vmatprep.subr.bf16.mxu0 0
  %97 = vmatpush1.bf16.msra.mxu0 %v73
  %98 = vmatprep.subr.bf16.mxu0 0
  %99 = vmatpush1.bf16.msra.mxu0 %v72
  %100 = vmatprep.subr.bf16.mxu0 0
  %101 = vmatpush2.bf16.msra.mxu0 0
  %102 = vmatprep.subr.bf16.mxu0 0
  %103 = vmatpush2.bf16.msra.mxu0 0
  %104 = vmatprep.subr.bf16.mxu0 0
  %105 = vmatpush2.bf16.msra.mxu0 0
  %106 = vmatprep.subr.bf16.mxu0 0
  %107 = vmatpush2.bf16.msra.mxu0 0
  %108 = vmatprep.subr.bf16.mxu0 0
  %109 = vmatpush2.bf16.msra.mxu0 0
  %110 = vmatprep.subr.bf16.mxu0 0
  %111 = vmatpush2.bf16.msra.mxu0 0
  %112 = vmatprep.subr.bf16.mxu0 0
  %113 = vmatpush2.bf16.msra.mxu0 0
  %114 = vmatprep.subr.bf16.mxu0 0
  %115 = vmatpush2.bf16.msra.mxu0 0
  %116 = vmatprep.mubr.bf16.mxu0 0
  %117 = vmatmul.mubr.bf16.gmra.mxu0 %v82
  %v118 = vpop.f32.mrf.mxu0
  %v119 = vadd.f32 %v54, %v118
  %v120 = vpop.f32.mrf.mxu0
  %v121 = vpop.f32.mrf.mxu0
  %v122 = vpop.f32.mrf.mxu0
  %123 = vdwg.mxu0
  %v124 = vxor.u32 %v119, 2147483648
  %v125 = vmul.f32 %v124, 1.442695
  %v126 = vpow.pop %v125
  %v127 = vadd.f32 %v126, 1.0
  %v128 = vrcp.pop %v127
  %v129 = vmul.f32 1.0, %v128
  %131 = vrot.lane.b32.xlu0 %v119, 32
  %v132 = vpop.permute.xlu0 %131
  %v134 = vmul.f32 %v129, %v132
  %136 = vrot.lane.b32.xlu0 %v134, 64
  %v137 = vpop.permute.xlu0 %136
  %v139 = vadd.f32 %v119, %v137
  %v140 = vtanh.pop %v139
  %v141 = vsub.f32 1.0, %v129
  %143 = vrot.lane.b32.xlu0 %v140, 96
  %v144 = vpop.permute.xlu0 %143
  %v146 = vmul.f32 %v141, %v144
  %v147 = vmul.f32 %v129, %v21
  %v148 = vadd.f32 %v146, %v147
  %v149 = vpack.c.bf16 %v148, %v148
  %151 = vrot.lane.b32.xlu0 %v149, 96
  %v152 = vpop.permute.xlu0 %151
  %v157 = vunpack.c.l.b16 %v30
  %v158 = vunpack.c.h.b16 %v30
  %v159 = vunpack.c.l.b16 %v31
  %v160 = vunpack.c.h.b16 %v31
  %v161 = vunpack.c.l.b16 %v32
  %v162 = vunpack.c.h.b16 %v32
  %v163 = vunpack.c.l.b16 %v33
  %v164 = vunpack.c.h.b16 %v33
  %v165 = vpack.c.b16 %v159, %v157
  %v166 = vpack.c.b16 %v160, %v158
  %v167 = vpack.c.b16 %v163, %v161
  %v168 = vpack.c.b16 %v164, %v162
  %vm173 = vcmask 261120
  %v175 = vsel %vm173, %v152, 0
  %177 = vmatprep.subr.bf16.mxu0 0
  %178 = vmatpush1.bf16.msra.mxu0 0
  %179 = vmatprep.subr.bf16.mxu0 0
  %180 = vmatpush1.bf16.msra.mxu0 0
  %181 = vmatprep.subr.bf16.mxu0 0
  %182 = vmatpush1.bf16.msra.mxu0 0
  %183 = vmatprep.subr.bf16.mxu0 0
  %184 = vmatpush1.bf16.msra.mxu0 0
  %185 = vmatprep.subr.bf16.mxu0 0
  %186 = vmatpush1.bf16.msra.mxu0 0
  %187 = vmatprep.subr.bf16.mxu0 0
  %188 = vmatpush1.bf16.msra.mxu0 0
  %189 = vmatprep.subr.bf16.mxu0 %v168
  %190 = vmatpush1.bf16.msra.mxu0 %v167
  %191 = vmatprep.subr.bf16.mxu0 %v166
  %192 = vmatpush1.bf16.msra.mxu0 %v165
  %193 = vmatprep.subr.bf16.mxu0 0
  %194 = vmatpush2.bf16.msra.mxu0 0
  %195 = vmatprep.subr.bf16.mxu0 0
  %196 = vmatpush2.bf16.msra.mxu0 0
  %197 = vmatprep.subr.bf16.mxu0 0
  %198 = vmatpush2.bf16.msra.mxu0 0
  %199 = vmatprep.subr.bf16.mxu0 0
  %200 = vmatpush2.bf16.msra.mxu0 0
  %201 = vmatprep.subr.bf16.mxu0 0
  %202 = vmatpush2.bf16.msra.mxu0 0
  %203 = vmatprep.subr.bf16.mxu0 0
  %204 = vmatpush2.bf16.msra.mxu0 0
  %205 = vmatprep.subr.bf16.mxu0 0
  %206 = vmatpush2.bf16.msra.mxu0 0
  %207 = vmatprep.subr.bf16.mxu0 0
  %208 = vmatpush2.bf16.msra.mxu0 0
  %209 = vmatprep.mubr.bf16.mxu0 0
  %210 = vmatmul.mubr.bf16.gmra.mxu0 %v175
  %v211 = vpop.f32.mrf.mxu0
  %v212 = vadd.f32 %v40, %v211
  %v213 = vpop.f32.mrf.mxu0
  %v214 = vadd.f32 %v44, %v213
  %v215 = vpop.f32.mrf.mxu0
  %v216 = vpop.f32.mrf.mxu0
  %217 = vdwg.mxu0
  %vm218 = vcmp.eq.s32.totalorder %v48, 0
  %v219 = vsel %vm218, %v214, 0.0
  %v220 = vxor.u32 %v212, 2147483648
  %v221 = vmul.f32 %v220, 1.442695
  %v222 = vpow.pop %v221
  %v223 = vadd.f32 %v222, 1.0
  %v224 = vrcp.pop %v223
  %v225 = vmul.f32 1.0, %v224
  %227 = vrot.lane.b32.xlu0 %v212, 32
  %v228 = vpop.permute.xlu0 %227
  %v230 = vmul.f32 %v225, %v228
  %232 = vrot.lane.b32.xlu0 %v230, 64
  %v233 = vpop.permute.xlu0 %232
  %v235 = vadd.f32 %v212, %v233
  %v236 = vtanh.pop %v235
  %v237 = vsub.f32 1.0, %v225
  %239 = vrot.lane.b32.xlu0 %v236, 96
  %v240 = vpop.permute.xlu0 %239
  %v242 = vmul.f32 %v237, %v240
  %v243 = vmul.f32 %v225, %v148
  %v244 = vadd.f32 %v242, %v243
  %v245 = vpack.c.bf16 %v244, %v244
  %247 = vrot.lane.b32.xlu0 %v245, 96
  %v248 = vpop.permute.xlu0 %247
  %v250 = vsel %vm173, %v248, 0
  %252 = vmatprep.subr.bf16.mxu0 0
  %253 = vmatpush1.bf16.msra.mxu0 0
  %254 = vmatprep.subr.bf16.mxu0 0
  %255 = vmatpush1.bf16.msra.mxu0 0
  %256 = vmatprep.subr.bf16.mxu0 0
  %257 = vmatpush1.bf16.msra.mxu0 0
  %258 = vmatprep.subr.bf16.mxu0 0
  %259 = vmatpush1.bf16.msra.mxu0 0
  %260 = vmatprep.subr.bf16.mxu0 0
  %261 = vmatpush1.bf16.msra.mxu0 0
  %262 = vmatprep.subr.bf16.mxu0 0
  %263 = vmatpush1.bf16.msra.mxu0 0
  %264 = vmatprep.subr.bf16.mxu0 %v168
  %265 = vmatpush1.bf16.msra.mxu0 %v167
  %266 = vmatprep.subr.bf16.mxu0 %v166
  %267 = vmatpush1.bf16.msra.mxu0 %v165
  %268 = vmatprep.subr.bf16.mxu0 0
  %269 = vmatpush2.bf16.msra.mxu0 0
  %270 = vmatprep.subr.bf16.mxu0 0
  %271 = vmatpush2.bf16.msra.mxu0 0
  %272 = vmatprep.subr.bf16.mxu0 0
  %273 = vmatpush2.bf16.msra.mxu0 0
  %274 = vmatprep.subr.bf16.mxu0 0
  %275 = vmatpush2.bf16.msra.mxu0 0
  %276 = vmatprep.subr.bf16.mxu0 0
  %277 = vmatpush2.bf16.msra.mxu0 0
  %278 = vmatprep.subr.bf16.mxu0 0
  %279 = vmatpush2.bf16.msra.mxu0 0
  %280 = vmatprep.subr.bf16.mxu0 0
  %281 = vmatpush2.bf16.msra.mxu0 0
  %282 = vmatprep.subr.bf16.mxu0 0
  %283 = vmatpush2.bf16.msra.mxu0 0
  %284 = vmatprep.mubr.bf16.mxu0 0
  %285 = vmatmul.mubr.bf16.gmra.mxu0 %v250
  %v286 = vpop.f32.mrf.mxu0
  %v287 = vadd.f32 %v40, %v286
  %v288 = vpop.f32.mrf.mxu0
  %v289 = vadd.f32 %v44, %v288
  %v290 = vpop.f32.mrf.mxu0
  %v291 = vpop.f32.mrf.mxu0
  %292 = vdwg.mxu0
  %vm293 = vcmp.eq.s32.totalorder %v48, 1
  %v294 = vsel %vm293, %v289, %v219
  %v295 = vxor.u32 %v287, 2147483648
  %v296 = vmul.f32 %v295, 1.442695
  %v297 = vpow.pop %v296
  %v298 = vadd.f32 %v297, 1.0
  %v299 = vrcp.pop %v298
  %v300 = vmul.f32 1.0, %v299
  %302 = vrot.lane.b32.xlu0 %v287, 32
  %v303 = vpop.permute.xlu0 %302
  %v305 = vmul.f32 %v300, %v303
  %307 = vrot.lane.b32.xlu0 %v305, 64
  %v308 = vpop.permute.xlu0 %307
  %v310 = vadd.f32 %v287, %v308
  %v311 = vtanh.pop %v310
  %v312 = vsub.f32 1.0, %v300
  %314 = vrot.lane.b32.xlu0 %v311, 96
  %v315 = vpop.permute.xlu0 %314
  %v317 = vmul.f32 %v312, %v315
  %v318 = vmul.f32 %v300, %v244
  %v319 = vadd.f32 %v317, %v318
  %v320 = vpack.c.bf16 %v319, %v319
  %322 = vrot.lane.b32.xlu0 %v320, 96
  %v323 = vpop.permute.xlu0 %322
  %v325 = vsel %vm173, %v323, 0
  %327 = vmatprep.subr.bf16.mxu0 0
  %328 = vmatpush1.bf16.msra.mxu0 0
  %329 = vmatprep.subr.bf16.mxu0 0
  %330 = vmatpush1.bf16.msra.mxu0 0
  %331 = vmatprep.subr.bf16.mxu0 0
  %332 = vmatpush1.bf16.msra.mxu0 0
  %333 = vmatprep.subr.bf16.mxu0 0
  %334 = vmatpush1.bf16.msra.mxu0 0
  %335 = vmatprep.subr.bf16.mxu0 0
  %336 = vmatpush1.bf16.msra.mxu0 0
  %337 = vmatprep.subr.bf16.mxu0 0
  %338 = vmatpush1.bf16.msra.mxu0 0
  %339 = vmatprep.subr.bf16.mxu0 %v168
  %340 = vmatpush1.bf16.msra.mxu0 %v167
  %341 = vmatprep.subr.bf16.mxu0 %v166
  %342 = vmatpush1.bf16.msra.mxu0 %v165
  %343 = vmatprep.subr.bf16.mxu0 0
  %344 = vmatpush2.bf16.msra.mxu0 0
  %345 = vmatprep.subr.bf16.mxu0 0
  %346 = vmatpush2.bf16.msra.mxu0 0
  %347 = vmatprep.subr.bf16.mxu0 0
  %348 = vmatpush2.bf16.msra.mxu0 0
  %349 = vmatprep.subr.bf16.mxu0 0
  %350 = vmatpush2.bf16.msra.mxu0 0
  %351 = vmatprep.subr.bf16.mxu0 0
  %352 = vmatpush2.bf16.msra.mxu0 0
  %353 = vmatprep.subr.bf16.mxu0 0
  %354 = vmatpush2.bf16.msra.mxu0 0
  %355 = vmatprep.subr.bf16.mxu0 0
  %356 = vmatpush2.bf16.msra.mxu0 0
  %357 = vmatprep.subr.bf16.mxu0 0
  %358 = vmatpush2.bf16.msra.mxu0 0
  %359 = vmatprep.mubr.bf16.mxu0 0
  %360 = vmatmul.mubr.bf16.gmra.mxu0 %v325
  %v361 = vpop.f32.mrf.mxu0
  %v362 = vadd.f32 %v40, %v361
  %v363 = vpop.f32.mrf.mxu0
  %v364 = vadd.f32 %v44, %v363
  %v365 = vpop.f32.mrf.mxu0
  %v366 = vpop.f32.mrf.mxu0
  %367 = vdwg.mxu0
  %vm368 = vcmp.eq.s32.totalorder %v48, 2
  %v369 = vsel %vm368, %v364, %v294
  %v370 = vxor.u32 %v362, 2147483648
  %v371 = vmul.f32 %v370, 1.442695
  %v372 = vpow.pop %v371
  %v373 = vadd.f32 %v372, 1.0
  %v374 = vrcp.pop %v373
  %v375 = vmul.f32 1.0, %v374
  %377 = vrot.lane.b32.xlu0 %v362, 32
  %v378 = vpop.permute.xlu0 %377
  %v380 = vmul.f32 %v375, %v378
  %382 = vrot.lane.b32.xlu0 %v380, 64
  %v383 = vpop.permute.xlu0 %382
  %v385 = vadd.f32 %v362, %v383
  %v386 = vtanh.pop %v385
  %v387 = vsub.f32 1.0, %v375
  %389 = vrot.lane.b32.xlu0 %v386, 96
  %v390 = vpop.permute.xlu0 %389
  %v392 = vmul.f32 %v387, %v390
  %v393 = vmul.f32 %v375, %v319
  %v394 = vadd.f32 %v392, %v393
  %v395 = vpack.c.bf16 %v394, %v394
  %397 = vrot.lane.b32.xlu0 %v395, 96
  %v398 = vpop.permute.xlu0 %397
  %v400 = vsel %vm173, %v398, 0
  %402 = vmatprep.subr.bf16.mxu0 0
  %403 = vmatpush1.bf16.msra.mxu0 0
  %404 = vmatprep.subr.bf16.mxu0 0
  %405 = vmatpush1.bf16.msra.mxu0 0
  %406 = vmatprep.subr.bf16.mxu0 0
  %407 = vmatpush1.bf16.msra.mxu0 0
  %408 = vmatprep.subr.bf16.mxu0 0
  %409 = vmatpush1.bf16.msra.mxu0 0
  %410 = vmatprep.subr.bf16.mxu0 0
  %411 = vmatpush1.bf16.msra.mxu0 0
  %412 = vmatprep.subr.bf16.mxu0 0
  %413 = vmatpush1.bf16.msra.mxu0 0
  %414 = vmatprep.subr.bf16.mxu0 %v168
  %415 = vmatpush1.bf16.msra.mxu0 %v167
  %416 = vmatprep.subr.bf16.mxu0 %v166
  %417 = vmatpush1.bf16.msra.mxu0 %v165
  %418 = vmatprep.subr.bf16.mxu0 0
  %419 = vmatpush2.bf16.msra.mxu0 0
  %420 = vmatprep.subr.bf16.mxu0 0
  %421 = vmatpush2.bf16.msra.mxu0 0
  %422 = vmatprep.subr.bf16.mxu0 0
  %423 = vmatpush2.bf16.msra.mxu0 0
  %424 = vmatprep.subr.bf16.mxu0 0
  %425 = vmatpush2.bf16.msra.mxu0 0
  %426 = vmatprep.subr.bf16.mxu0 0
  %427 = vmatpush2.bf16.msra.mxu0 0
  %428 = vmatprep.subr.bf16.mxu0 0
  %429 = vmatpush2.bf16.msra.mxu0 0
  %430 = vmatprep.subr.bf16.mxu0 0
  %431 = vmatpush2.bf16.msra.mxu0 0
  %432 = vmatprep.subr.bf16.mxu0 0
  %433 = vmatpush2.bf16.msra.mxu0 0
  %434 = vmatprep.mubr.bf16.mxu0 0
  %435 = vmatmul.mubr.bf16.gmra.mxu0 %v400
  %v436 = vpop.f32.mrf.mxu0
  %v437 = vadd.f32 %v40, %v436
  %v438 = vpop.f32.mrf.mxu0
  %v439 = vadd.f32 %v44, %v438
  %v440 = vpop.f32.mrf.mxu0
  %v441 = vpop.f32.mrf.mxu0
  %442 = vdwg.mxu0
  %vm443 = vcmp.eq.s32.totalorder %v48, 3
  %v444 = vsel %vm443, %v439, %v369
  %v445 = vxor.u32 %v437, 2147483648
  %v446 = vmul.f32 %v445, 1.442695
  %v447 = vpow.pop %v446
  %v448 = vadd.f32 %v447, 1.0
  %v449 = vrcp.pop %v448
  %v450 = vmul.f32 1.0, %v449
  %452 = vrot.lane.b32.xlu0 %v437, 32
  %v453 = vpop.permute.xlu0 %452
  %v455 = vmul.f32 %v450, %v453
  %457 = vrot.lane.b32.xlu0 %v455, 64
  %v458 = vpop.permute.xlu0 %457
  %v460 = vadd.f32 %v437, %v458
  %v461 = vtanh.pop %v460
  %v462 = vsub.f32 1.0, %v450
  %464 = vrot.lane.b32.xlu0 %v461, 96
  %v465 = vpop.permute.xlu0 %464
  %v467 = vmul.f32 %v462, %v465
  %v468 = vmul.f32 %v450, %v394
  %v469 = vadd.f32 %v467, %v468
  %v470 = vpack.c.bf16 %v469, %v469
  %472 = vrot.lane.b32.xlu0 %v470, 96
  %v473 = vpop.permute.xlu0 %472
  %v475 = vsel %vm173, %v473, 0
  %477 = vmatprep.subr.bf16.mxu0 0
  %478 = vmatpush1.bf16.msra.mxu0 0
  %479 = vmatprep.subr.bf16.mxu0 0
  %480 = vmatpush1.bf16.msra.mxu0 0
  %481 = vmatprep.subr.bf16.mxu0 0
  %482 = vmatpush1.bf16.msra.mxu0 0
  %483 = vmatprep.subr.bf16.mxu0 0
  %484 = vmatpush1.bf16.msra.mxu0 0
  %485 = vmatprep.subr.bf16.mxu0 0
  %486 = vmatpush1.bf16.msra.mxu0 0
  %487 = vmatprep.subr.bf16.mxu0 0
  %488 = vmatpush1.bf16.msra.mxu0 0
  %489 = vmatprep.subr.bf16.mxu0 %v168
  %490 = vmatpush1.bf16.msra.mxu0 %v167
  %491 = vmatprep.subr.bf16.mxu0 %v166
  %492 = vmatpush1.bf16.msra.mxu0 %v165
  %493 = vmatprep.subr.bf16.mxu0 0
  %494 = vmatpush2.bf16.msra.mxu0 0
  %495 = vmatprep.subr.bf16.mxu0 0
  %496 = vmatpush2.bf16.msra.mxu0 0
  %497 = vmatprep.subr.bf16.mxu0 0
  %498 = vmatpush2.bf16.msra.mxu0 0
  %499 = vmatprep.subr.bf16.mxu0 0
  %500 = vmatpush2.bf16.msra.mxu0 0
  %501 = vmatprep.subr.bf16.mxu0 0
  %502 = vmatpush2.bf16.msra.mxu0 0
  %503 = vmatprep.subr.bf16.mxu0 0
  %504 = vmatpush2.bf16.msra.mxu0 0
  %505 = vmatprep.subr.bf16.mxu0 0
  %506 = vmatpush2.bf16.msra.mxu0 0
  %507 = vmatprep.subr.bf16.mxu0 0
  %508 = vmatpush2.bf16.msra.mxu0 0
  %509 = vmatprep.mubr.bf16.mxu0 0
  %510 = vmatmul.mubr.bf16.gmra.mxu0 %v475
  %v511 = vpop.f32.mrf.mxu0
  %v512 = vadd.f32 %v40, %v511
  %v513 = vpop.f32.mrf.mxu0
  %v514 = vadd.f32 %v44, %v513
  %v515 = vpop.f32.mrf.mxu0
  %v516 = vpop.f32.mrf.mxu0
  %517 = vdwg.mxu0
  %vm518 = vcmp.eq.s32.totalorder %v48, 4
  %v519 = vsel %vm518, %v514, %v444
  %v520 = vxor.u32 %v512, 2147483648
  %v521 = vmul.f32 %v520, 1.442695
  %v522 = vpow.pop %v521
  %v523 = vadd.f32 %v522, 1.0
  %v524 = vrcp.pop %v523
  %v525 = vmul.f32 1.0, %v524
  %527 = vrot.lane.b32.xlu0 %v512, 32
  %v528 = vpop.permute.xlu0 %527
  %v530 = vmul.f32 %v525, %v528
  %532 = vrot.lane.b32.xlu0 %v530, 64
  %v533 = vpop.permute.xlu0 %532
  %v535 = vadd.f32 %v512, %v533
  %v536 = vtanh.pop %v535
  %v537 = vsub.f32 1.0, %v525
  %539 = vrot.lane.b32.xlu0 %v536, 96
  %v540 = vpop.permute.xlu0 %539
  %v542 = vmul.f32 %v537, %v540
  %v543 = vmul.f32 %v525, %v469
  %v544 = vadd.f32 %v542, %v543
  %v545 = vpack.c.bf16 %v544, %v544
  %547 = vrot.lane.b32.xlu0 %v545, 96
  %v548 = vpop.permute.xlu0 %547
  %v550 = vsel %vm173, %v548, 0
  %552 = vmatprep.subr.bf16.mxu0 0
  %553 = vmatpush1.bf16.msra.mxu0 0
  %554 = vmatprep.subr.bf16.mxu0 0
  %555 = vmatpush1.bf16.msra.mxu0 0
  %556 = vmatprep.subr.bf16.mxu0 0
  %557 = vmatpush1.bf16.msra.mxu0 0
  %558 = vmatprep.subr.bf16.mxu0 0
  %559 = vmatpush1.bf16.msra.mxu0 0
  %560 = vmatprep.subr.bf16.mxu0 0
  %561 = vmatpush1.bf16.msra.mxu0 0
  %562 = vmatprep.subr.bf16.mxu0 0
  %563 = vmatpush1.bf16.msra.mxu0 0
  %564 = vmatprep.subr.bf16.mxu0 %v168
  %565 = vmatpush1.bf16.msra.mxu0 %v167
  %566 = vmatprep.subr.bf16.mxu0 %v166
  %567 = vmatpush1.bf16.msra.mxu0 %v165
  %568 = vmatprep.subr.bf16.mxu0 0
  %569 = vmatpush2.bf16.msra.mxu0 0
  %570 = vmatprep.subr.bf16.mxu0 0
  %571 = vmatpush2.bf16.msra.mxu0 0
  %572 = vmatprep.subr.bf16.mxu0 0
  %573 = vmatpush2.bf16.msra.mxu0 0
  %574 = vmatprep.subr.bf16.mxu0 0
  %575 = vmatpush2.bf16.msra.mxu0 0
  %576 = vmatprep.subr.bf16.mxu0 0
  %577 = vmatpush2.bf16.msra.mxu0 0
  %578 = vmatprep.subr.bf16.mxu0 0
  %579 = vmatpush2.bf16.msra.mxu0 0
  %580 = vmatprep.subr.bf16.mxu0 0
  %581 = vmatpush2.bf16.msra.mxu0 0
  %582 = vmatprep.subr.bf16.mxu0 0
  %583 = vmatpush2.bf16.msra.mxu0 0
  %584 = vmatprep.mubr.bf16.mxu0 0
  %585 = vmatmul.mubr.bf16.gmra.mxu0 %v550
  %v586 = vpop.f32.mrf.mxu0
  %v587 = vadd.f32 %v40, %v586
  %v588 = vpop.f32.mrf.mxu0
  %v589 = vadd.f32 %v44, %v588
  %v590 = vpop.f32.mrf.mxu0
  %v591 = vpop.f32.mrf.mxu0
  %592 = vdwg.mxu0
  %vm593 = vcmp.eq.s32.totalorder %v48, 5
  %v594 = vsel %vm593, %v589, %v519
  %v595 = vxor.u32 %v587, 2147483648
  %v596 = vmul.f32 %v595, 1.442695
  %v597 = vpow.pop %v596
  %v598 = vadd.f32 %v597, 1.0
  %v599 = vrcp.pop %v598
  %v600 = vmul.f32 1.0, %v599
  %602 = vrot.lane.b32.xlu0 %v587, 32
  %v603 = vpop.permute.xlu0 %602
  %v605 = vmul.f32 %v600, %v603
  %607 = vrot.lane.b32.xlu0 %v605, 64
  %v608 = vpop.permute.xlu0 %607
  %v610 = vadd.f32 %v587, %v608
  %v611 = vtanh.pop %v610
  %v612 = vsub.f32 1.0, %v600
  %614 = vrot.lane.b32.xlu0 %v611, 96
  %v615 = vpop.permute.xlu0 %614
  %v617 = vmul.f32 %v612, %v615
  %v618 = vmul.f32 %v600, %v544
  %v619 = vadd.f32 %v617, %v618
  %v620 = vpack.c.bf16 %v619, %v619
  %622 = vrot.lane.b32.xlu0 %v620, 96
  %v623 = vpop.permute.xlu0 %622
  %v625 = vsel %vm173, %v623, 0
  %627 = vmatprep.subr.bf16.mxu0 0
  %628 = vmatpush1.bf16.msra.mxu0 0
  %629 = vmatprep.subr.bf16.mxu0 0
  %630 = vmatpush1.bf16.msra.mxu0 0
  %631 = vmatprep.subr.bf16.mxu0 0
  %632 = vmatpush1.bf16.msra.mxu0 0
  %633 = vmatprep.subr.bf16.mxu0 0
  %634 = vmatpush1.bf16.msra.mxu0 0
  %635 = vmatprep.subr.bf16.mxu0 0
  %636 = vmatpush1.bf16.msra.mxu0 0
  %637 = vmatprep.subr.bf16.mxu0 0
  %638 = vmatpush1.bf16.msra.mxu0 0
  %639 = vmatprep.subr.bf16.mxu0 %v168
  %640 = vmatpush1.bf16.msra.mxu0 %v167
  %641 = vmatprep.subr.bf16.mxu0 %v166
  %642 = vmatpush1.bf16.msra.mxu0 %v165
  %643 = vmatprep.subr.bf16.mxu0 0
  %644 = vmatpush2.bf16.msra.mxu0 0
  %645 = vmatprep.subr.bf16.mxu0 0
  %646 = vmatpush2.bf16.msra.mxu0 0
  %647 = vmatprep.subr.bf16.mxu0 0
  %648 = vmatpush2.bf16.msra.mxu0 0
  %649 = vmatprep.subr.bf16.mxu0 0
  %650 = vmatpush2.bf16.msra.mxu0 0
  %651 = vmatprep.subr.bf16.mxu0 0
  %652 = vmatpush2.bf16.msra.mxu0 0
  %653 = vmatprep.subr.bf16.mxu0 0
  %654 = vmatpush2.bf16.msra.mxu0 0
  %655 = vmatprep.subr.bf16.mxu0 0
  %656 = vmatpush2.bf16.msra.mxu0 0
  %657 = vmatprep.subr.bf16.mxu0 0
  %658 = vmatpush2.bf16.msra.mxu0 0
  %659 = vmatprep.mubr.bf16.mxu0 0
  %660 = vmatmul.mubr.bf16.gmra.mxu0 %v625
  %v661 = vpop.f32.mrf.mxu0
  %v662 = vadd.f32 %v40, %v661
  %v663 = vpop.f32.mrf.mxu0
  %v664 = vadd.f32 %v44, %v663
  %v665 = vpop.f32.mrf.mxu0
  %v666 = vpop.f32.mrf.mxu0
  %667 = vdwg.mxu0
  %vm668 = vcmp.eq.s32.totalorder %v48, 6
  %v669 = vsel %vm668, %v664, %v594
  %v670 = vxor.u32 %v662, 2147483648
  %v671 = vmul.f32 %v670, 1.442695
  %v672 = vpow.pop %v671
  %v673 = vadd.f32 %v672, 1.0
  %v674 = vrcp.pop %v673
  %v675 = vmul.f32 1.0, %v674
  %677 = vrot.lane.b32.xlu0 %v662, 32
  %v678 = vpop.permute.xlu0 %677
  %v680 = vmul.f32 %v675, %v678
  %682 = vrot.lane.b32.xlu0 %v680, 64
  %v683 = vpop.permute.xlu0 %682
  %v685 = vadd.f32 %v662, %v683
  %v686 = vtanh.pop %v685
  %v687 = vsub.f32 1.0, %v675
  %689 = vrot.lane.b32.xlu0 %v686, 96
  %v690 = vpop.permute.xlu0 %689
  %v692 = vmul.f32 %v687, %v690
  %v693 = vmul.f32 %v675, %v619
  %v694 = vadd.f32 %v692, %v693
  %v695 = vpack.c.bf16 %v694, %v694
  %697 = vrot.lane.b32.xlu0 %v695, 96
  %v698 = vpop.permute.xlu0 %697
  %v700 = vsel %vm173, %v698, 0
  %702 = vmatprep.subr.bf16.mxu0 0
  %703 = vmatpush1.bf16.msra.mxu0 0
  %704 = vmatprep.subr.bf16.mxu0 0
  %705 = vmatpush1.bf16.msra.mxu0 0
  %706 = vmatprep.subr.bf16.mxu0 0
  %707 = vmatpush1.bf16.msra.mxu0 0
  %708 = vmatprep.subr.bf16.mxu0 0
  %709 = vmatpush1.bf16.msra.mxu0 0
  %710 = vmatprep.subr.bf16.mxu0 0
  %711 = vmatpush1.bf16.msra.mxu0 0
  %712 = vmatprep.subr.bf16.mxu0 0
  %713 = vmatpush1.bf16.msra.mxu0 0
  %714 = vmatprep.subr.bf16.mxu0 %v168
  %715 = vmatpush1.bf16.msra.mxu0 %v167
  %716 = vmatprep.subr.bf16.mxu0 %v166
  %717 = vmatpush1.bf16.msra.mxu0 %v165
  %718 = vmatprep.subr.bf16.mxu0 0
  %719 = vmatpush2.bf16.msra.mxu0 0
  %720 = vmatprep.subr.bf16.mxu0 0
  %721 = vmatpush2.bf16.msra.mxu0 0
  %722 = vmatprep.subr.bf16.mxu0 0
  %723 = vmatpush2.bf16.msra.mxu0 0
  %724 = vmatprep.subr.bf16.mxu0 0
  %725 = vmatpush2.bf16.msra.mxu0 0
  %726 = vmatprep.subr.bf16.mxu0 0
  %727 = vmatpush2.bf16.msra.mxu0 0
  %728 = vmatprep.subr.bf16.mxu0 0
  %729 = vmatpush2.bf16.msra.mxu0 0
  %730 = vmatprep.subr.bf16.mxu0 0
  %731 = vmatpush2.bf16.msra.mxu0 0
  %732 = vmatprep.subr.bf16.mxu0 0
  %733 = vmatpush2.bf16.msra.mxu0 0
  %734 = vmatprep.mubr.bf16.mxu0 0
  %735 = vmatmul.mubr.bf16.gmra.mxu0 %v700
  %v736 = vpop.f32.mrf.mxu0
  %v737 = vpop.f32.mrf.mxu0
  %v738 = vadd.f32 %v44, %v737
  %v739 = vpop.f32.mrf.mxu0
  %v740 = vpop.f32.mrf.mxu0
  %741 = vdwg.mxu0
  %vm742 = vcmp.eq.s32.totalorder %v48, 7
  %v743 = vsel %vm742, %v738, %v669
  %744 = vst [vmem:[%s5] sm:$0xff] %v743
  // Predicated region
  $region22: #{gru_de_forward.1} parent=0 // pred_check
    _
  $region23: #{gru_de_forward.1} parent=0 // pred_check_branch
    %746 = sbr.rel (0) target = $region25
  $region24: #{gru_de_forward.1} parent=0 // pred_region
    _
  $region25: #{gru_de_forward.1} parent=0 // pred_fallthru
    _
  // Predicated region
  $region26: #{gru_de_forward.1} parent=0 // pred_check
    _
  $region27: #{gru_de_forward.1} parent=0 // pred_check_branch
    %748 = sbr.rel (0) target = $region29
  $region28: #{gru_de_forward.1} parent=0 // pred_region
    _
  $region29: #{gru_de_forward.1} parent=0 // pred_fallthru
    _

</llo_original>
